<compile_context>
chip_gen: v7x
topology: tpu7x:2x2x1
jax: 0.10.0
libtpu: 0.0.40
codegen_flags: <defaults>
</compile_context>

<pallas_src>
import functools
import math

import jax
import jax.numpy as jnp
from jax.experimental import pallas as pl
from jax.experimental.pallas import tpu as pltpu

_HALF_LOG_2PI = 0.5 * math.log(2.0 * math.pi)
_LOG_2 = math.log(2.0)


def _softplus(x):
    # Numerically stable softplus built from plain jnp elementwise ops
    # (identical formula used in kernel and reference).
    return jnp.maximum(x, 0.0) + jnp.log(1.0 + jnp.exp(-jnp.abs(x)))


# ------------------------------ kernel --------------------------------------

def gaussian_head_kernel(x_ref, w_ref, b_ref, ls_ref, eps_ref,
                         act_ref, logp_ref, mu_ref, logstd_ref, ent_ref,
                         *, action_dim, dp, state_dependent_std,
                         log_std_min, log_std_max, max_action):
    x = x_ref[...].astype(jnp.float32)
    # One MXU matmul produces mu (and, if state-dependent, raw log_std) at once.
    y = jnp.dot(x, w_ref[...], preferred_element_type=jnp.float32) + b_ref[...]

    if state_dependent_std:
        mu = y[:, :dp]
        t = jnp.tanh(y[:, dp:])
        log_std = log_std_min + 0.5 * (log_std_max - log_std_min) * (t + 1.0)
    else:
        mu = y
        ls = jnp.clip(ls_ref[...], log_std_min, log_std_max)   # (1, dp)
        log_std = jnp.broadcast_to(ls, mu.shape)

    std = jnp.exp(log_std)
    eps = eps_ref[...].astype(jnp.float32)
    z = mu + std * eps                                    # pre-squash rsample

    # Normal(mu, std).log_prob(z) with z = mu + std*eps
    lp = -0.5 * eps * eps - log_std - _HALF_LOG_2PI

    if max_action is not None:
        action = max_action * jnp.tanh(z)
        # TanhTransform: 2*(log2 - z - softplus(-2z)); AffineTransform: +log(scale)
        log_det = 2.0 * (_LOG_2 - z - _softplus(-2.0 * z)) + math.log(max_action)
        lp = lp - log_det
        mu_out = max_action * jnp.tanh(mu)
    else:
        action = z
        mu_out = mu

    entropy = 0.5 + _HALF_LOG_2PI + log_std

    # Mask padded lanes out of the per-row log_prob sum.
    lane = jax.lax.broadcasted_iota(jnp.int32, lp.shape, 1)
    logp = jnp.sum(jnp.where(lane < action_dim, lp, 0.0), axis=-1, keepdims=True)

    act_ref[...] = action.astype(act_ref.dtype)
    logp_ref[...] = logp.astype(logp_ref.dtype)
    mu_ref[...] = mu_out.astype(mu_ref.dtype)
    logstd_ref[...] = log_std.astype(logstd_ref.dtype)
    ent_ref[...] = entropy.astype(ent_ref.dtype)


# ------------------------------ wrapper --------------------------------------

def _round_up(x, m):
    return ((x + m - 1) // m) * m


def gaussian_head_forward(x, mu_w, mu_b, log_std_param=None, ls_w=None, ls_b=None,
                          *, action_dim, log_std_min=-20.0, log_std_max=2.0,
                          max_action=None, state_dependent_std=False,
                          eps=None, key=None, block_batch=256):
    """Fused GaussianHead forward (sampling path).

    x:             (B, F) features
    mu_w, mu_b:    PyTorch-layout Linear params (A, F), (A,)
    log_std_param: (A,)            used iff state_dependent_std=False
    ls_w, ls_b:    (A, F), (A,)    used iff state_dependent_std=True
    eps:           (B, A) standard-normal noise (rsample); drawn from `key` if None

    Returns (action, log_prob, mu_squashed, log_std, entropy)
            (B,A)   (B,)      (B,A)        (B,A)    (B,A)
    """
    B, F = x.shape
    A = action_dim
    Dp = _round_up(max(A, 1), 128)                   # lane-dense output width

    def pad_w(w):                                    # (A, F) -> (F, Dp)
        return jnp.zeros((F, Dp), jnp.float32).at[:, :A].set(
            w.astype(jnp.float32).T)

    def pad_row(v):                                  # (A,) -> (1, Dp)
        return jnp.zeros((1, Dp), jnp.float32).at[0, :A].set(
            v.astype(jnp.float32))

    if state_dependent_std:
        w_cat = jnp.concatenate([pad_w(mu_w), pad_w(ls_w)], axis=1)   # (F, 2Dp)
        b_cat = jnp.concatenate([pad_row(mu_b), pad_row(ls_b)], axis=1)
        ls_row = jnp.zeros((1, Dp), jnp.float32)     # unused in this branch
        n_out = 2 * Dp
    else:
        w_cat = pad_w(mu_w)
        b_cat = pad_row(mu_b)
        ls_row = pad_row(log_std_param)
        n_out = Dp

    if eps is None:
        assert key is not None, "need eps or key for rsample"
        eps = jax.random.normal(key, (B, A), dtype=jnp.float32)
    eps_p = jnp.zeros((B, Dp), jnp.float32).at[:, :A].set(eps.astype(jnp.float32))

    # Batch tiling: sublane-aligned tile, pipelined ("parallel") across the grid.
    tb = min(block_batch, _round_up(B, 8))
    Bp = _round_up(B, tb)
    xf = x.astype(jnp.float32)
    if Bp != B:
        xf = jnp.pad(xf, ((0, Bp - B), (0, 0)))
        eps_p = jnp.pad(eps_p, ((0, Bp - B), (0, 0)))
    grid = (Bp // tb,)

    x_spec = pl.BlockSpec((tb, F), lambda i: (i, 0))
    w_spec = pl.BlockSpec((F, n_out), lambda i: (0, 0))
    b_spec = pl.BlockSpec((1, n_out), lambda i: (0, 0))
    ls_spec = pl.BlockSpec((1, Dp), lambda i: (0, 0))
    eps_spec = pl.BlockSpec((tb, Dp), lambda i: (i, 0))
    vec_out = pl.BlockSpec((tb, Dp), lambda i: (i, 0))
    logp_out = pl.BlockSpec((tb, 1), lambda i: (i, 0))

    out_shape = (
        jax.ShapeDtypeStruct((Bp, Dp), jnp.float32),   # action
        jax.ShapeDtypeStruct((Bp, 1), jnp.float32),    # log_prob
        jax.ShapeDtypeStruct((Bp, Dp), jnp.float32),   # mu (squashed)
        jax.ShapeDtypeStruct((Bp, Dp), jnp.float32),   # log_std
        jax.ShapeDtypeStruct((Bp, Dp), jnp.float32),   # entropy
    )

    # VMEM budget: double-buffered tiles + resident params, with headroom.
    need = 4 * (2 * tb * (F + Dp)                    # x, eps tiles
                + 2 * (F * n_out + n_out + Dp)       # weight / bias / log_std
                + 2 * (4 * tb * Dp + tb))            # 5 output tiles
    vmem_limit = int(min(max(4 * need, 32 * 1024 * 1024), 48 * 1024 * 1024))

    flops = 2 * Bp * F * n_out + 16 * Bp * Dp
    transcendentals = 6 * Bp * Dp
    bytes_accessed = 4 * (Bp * F + F * n_out + n_out + Dp
                          + Bp * Dp + Bp * (4 * Dp + 1))
    cost = pl.CostEstimate(flops=int(flops),
                           transcendentals=int(transcendentals),
                           bytes_accessed=int(bytes_accessed))

    kernel = functools.partial(
        gaussian_head_kernel,
        action_dim=A, dp=Dp, state_dependent_std=state_dependent_std,
        log_std_min=float(log_std_min), log_std_max=float(log_std_max),
        max_action=None if max_action is None else float(max_action))

    action_p, logp_p, mu_p, logstd_p, ent_p = pl.pallas_call(
        kernel,
        out_shape=out_shape,
        grid=grid,
        in_specs=[x_spec, w_spec, b_spec, ls_spec, eps_spec],
        out_specs=(vec_out, logp_out, vec_out, vec_out, vec_out),
        compiler_params=pltpu.CompilerParams(
            dimension_semantics=("parallel",),
            vmem_limit_bytes=vmem_limit),
        cost_estimate=cost,
    )(xf, w_cat, b_cat, ls_row, eps_p)

    return (action_p[:B, :A], logp_p[:B, 0], mu_p[:B, :A],
            logstd_p[:B, :A], ent_p[:B, :A])


# ------------------------------ reference ------------------------------------

def gaussian_head_ref(x, mu_w, mu_b, log_std_param=None, ls_w=None, ls_b=None,
                      *, log_std_min=-20.0, log_std_max=2.0, max_action=None,
                      state_dependent_std=False, eps=None):
    x = x.astype(jnp.float32)
    mu = x @ mu_w.astype(jnp.float32).T + mu_b
    if state_dependent_std:
        raw = x @ ls_w.astype(jnp.float32).T + ls_b
        log_std = log_std_min + 0.5 * (log_std_max - log_std_min) * (jnp.tanh(raw) + 1.0)
    else:
        log_std = jnp.broadcast_to(
            jnp.clip(log_std_param, log_std_min, log_std_max), mu.shape)
    std = jnp.exp(log_std)
    z = mu + std * eps
    lp = -0.5 * eps * eps - log_std - _HALF_LOG_2PI
    if max_action is not None:
        action = max_action * jnp.tanh(z)
        log_det = 2.0 * (_LOG_2 - z - _softplus(-2.0 * z)) + math.log(max_action)
        lp = lp - log_det
        mu_sq = max_action * jnp.tanh(mu)
    else:
        action = z
        mu_sq = mu
    entropy = 0.5 + _HALF_LOG_2PI + log_std
    return action, lp.sum(-1), mu_sq, log_std, entropy


# -------------------------------- main ---------------------------------------

if __name__ == "__main__":
    key = jax.random.PRNGKey(0)
    B, F, A = 8, 64, 6
    ks = jax.random.split(key, 6)

    x = jax.random.normal(ks[0], (B, F), dtype=jnp.float32)
    # reset_parameters(): uniform(-0.003, 0.003) for Linear weights/biases
    mu_w = jax.random.uniform(ks[1], (A, F), minval=-0.003, maxval=0.003, dtype=jnp.float32)
    mu_b = jax.random.uniform(ks[2], (A,), minval=-0.003, maxval=0.003, dtype=jnp.float32)
    ls_w = jax.random.uniform(ks[3], (A, F), minval=-0.003, maxval=0.003, dtype=jnp.float32)
    ls_b = jax.random.uniform(ks[4], (A,), minval=-0.003, maxval=0.003, dtype=jnp.float32)
    log_std_param = jnp.zeros((A,), jnp.float32)          # nn.Parameter(zeros)
    eps = jax.random.normal(ks[5], (B, A), dtype=jnp.float32)

    # Case 1: state-dependent std + tanh/affine squash (max_action=1.0).
    out1 = gaussian_head_forward(x, mu_w, mu_b, ls_w=ls_w, ls_b=ls_b,
                                 action_dim=A, max_action=1.0,
                                 state_dependent_std=True, eps=eps)
    jax.block_until_ready(out1)
    ref1 = gaussian_head_ref(x, mu_w, mu_b, ls_w=ls_w, ls_b=ls_b,
                             max_action=1.0, state_dependent_std=True, eps=eps)
    for got, ref in zip(out1, ref1):
        assert jnp.allclose(got, ref, atol=1e-4, rtol=1e-4), float(jnp.abs(got - ref).max())

    # Case 2: state-independent std, no squash (max_action=None).
    out2 = gaussian_head_forward(x, mu_w, mu_b, log_std_param=log_std_param,
                                 action_dim=A, max_action=None,
                                 state_dependent_std=False, eps=eps)
    jax.block_until_ready(out2)
    ref2 = gaussian_head_ref(x, mu_w, mu_b, log_std_param=log_std_param,
                             max_action=None, state_dependent_std=False, eps=eps)
    for got, ref in zip(out2, ref2):
        assert jnp.allclose(got, ref, atol=1e-4, rtol=1e-4), float(jnp.abs(got - ref).max())

    print("KERNEL_OK")
</pallas_src>

<mosaic_0001>
module attributes {stable_mosaic.version = 11 : i64} {
  func.func @gaussian_head_kernel(%arg0: i32, %arg1: memref<8x64xf32, #tpu.memory_space<vmem>>, %arg2: memref<64x256xf32, #tpu.memory_space<vmem>>, %arg3: memref<1x256xf32, #tpu.memory_space<vmem>>, %arg4: memref<1x128xf32, #tpu.memory_space<vmem>>, %arg5: memref<8x128xf32, #tpu.memory_space<vmem>>, %arg6: memref<8x128xf32, #tpu.memory_space<vmem>>, %arg7: memref<8x1xf32, #tpu.memory_space<vmem>>, %arg8: memref<8x128xf32, #tpu.memory_space<vmem>>, %arg9: memref<8x128xf32, #tpu.memory_space<vmem>>, %arg10: memref<8x128xf32, #tpu.memory_space<vmem>>) attributes {dimension_semantics = [#tpu.dimension_semantics<parallel>], iteration_bounds = array<i64: 1>, scalar_prefetch = 0 : i64, scratch_operands = 0 : i64, tpu.core_type = #tpu.core_type<tc>, window_params = [{transform_indices = @transform_0, window_bounds = array<i64: 8, 64>}, {pipeline_mode = #tpu.pipeline_mode<synchronous>, transform_indices = @transform_1, window_bounds = array<i64: 64, 256>}, {pipeline_mode = #tpu.pipeline_mode<synchronous>, transform_indices = @transform_2, window_bounds = array<i64: 1, 256>}, {pipeline_mode = #tpu.pipeline_mode<synchronous>, transform_indices = @transform_3, window_bounds = array<i64: 1, 128>}, {transform_indices = @transform_4, window_bounds = array<i64: 8, 128>}, {transform_indices = @transform_5, window_bounds = array<i64: 8, 128>}, {transform_indices = @transform_6, window_bounds = array<i64: 8, 1>}, {transform_indices = @transform_7, window_bounds = array<i64: 8, 128>}, {transform_indices = @transform_8, window_bounds = array<i64: 8, 128>}, {transform_indices = @transform_9, window_bounds = array<i64: 8, 128>}]} {
    %c0 = arith.constant 0 : index
    %c0_0 = arith.constant 0 : index
    %0 = vector.load %arg1[%c0, %c0_0] : memref<8x64xf32, #tpu.memory_space<vmem>>, vector<8x64xf32>
    %c0_1 = arith.constant 0 : index
    %c0_2 = arith.constant 0 : index
    %1 = vector.load %arg2[%c0_1, %c0_2] : memref<64x256xf32, #tpu.memory_space<vmem>>, vector<64x256xf32>
    %cst = arith.constant dense<0.000000e+00> : vector<8x256xf32>
    %2 = tpu.matmul %0, %1, %cst {dimension_numbers = #tpu.dot_dimension_numbers<[1], [0], [0], [1], [0, 0, 1, 1], [], []>} : vector<8x64xf32>, vector<64x256xf32>, vector<8x256xf32> -> vector<8x256xf32>
    %c0_3 = arith.constant 0 : index
    %c0_4 = arith.constant 0 : index
    %3 = vector.load %arg3[%c0_3, %c0_4] : memref<1x256xf32, #tpu.memory_space<vmem>>, vector<1x256xf32>
    %4 = vector.broadcast %3 : vector<1x256xf32> to vector<8x256xf32>
    %5 = arith.addf %2, %4 : vector<8x256xf32>
    %6 = vector.extract_strided_slice %5 {offsets = [0, 0], sizes = [8, 128], strides = [1, 1]} : vector<8x256xf32> to vector<8x128xf32>
    %7 = vector.extract_strided_slice %5 {offsets = [0, 128], sizes = [8, 128], strides = [1, 1]} : vector<8x256xf32> to vector<8x128xf32>
    %8 = math.tanh %7 : vector<8x128xf32>
    %cst_5 = arith.constant 1.000000e+00 : f32
    %9 = vector.broadcast %cst_5 : f32 to vector<8x128xf32>
    %10 = arith.addf %8, %9 : vector<8x128xf32>
    %cst_6 = arith.constant 1.100000e+01 : f32
    %11 = vector.broadcast %cst_6 : f32 to vector<8x128xf32>
    %12 = arith.mulf %11, %10 : vector<8x128xf32>
    %cst_7 = arith.constant -2.000000e+01 : f32
    %13 = vector.broadcast %cst_7 : f32 to vector<8x128xf32>
    %14 = arith.addf %13, %12 : vector<8x128xf32>
    %15 = math.exp %14 : vector<8x128xf32>
    %c0_8 = arith.constant 0 : index
    %c0_9 = arith.constant 0 : index
    %16 = vector.load %arg5[%c0_8, %c0_9] : memref<8x128xf32, #tpu.memory_space<vmem>>, vector<8x128xf32>
    %17 = arith.mulf %15, %16 : vector<8x128xf32>
    %18 = arith.addf %6, %17 : vector<8x128xf32>
    %cst_10 = arith.constant -5.000000e-01 : f32
    %19 = vector.broadcast %cst_10 : f32 to vector<8x128xf32>
    %20 = arith.mulf %19, %16 : vector<8x128xf32>
    %21 = arith.mulf %20, %16 : vector<8x128xf32>
    %22 = arith.subf %21, %14 : vector<8x128xf32>
    %cst_11 = arith.constant 0.918938517 : f32
    %23 = vector.broadcast %cst_11 : f32 to vector<8x128xf32>
    %24 = arith.subf %22, %23 : vector<8x128xf32>
    %25 = math.tanh %18 : vector<8x128xf32>
    %cst_12 = arith.constant 1.000000e+00 : f32
    %26 = vector.broadcast %cst_12 : f32 to vector<8x128xf32>
    %27 = arith.mulf %26, %25 : vector<8x128xf32>
    %cst_13 = arith.constant 0.693147182 : f32
    %28 = vector.broadcast %cst_13 : f32 to vector<8x128xf32>
    %29 = arith.subf %28, %18 : vector<8x128xf32>
    %cst_14 = arith.constant -2.000000e+00 : f32
    %30 = vector.broadcast %cst_14 : f32 to vector<8x128xf32>
    %31 = arith.mulf %30, %18 : vector<8x128xf32>
    %cst_15 = arith.constant 0.000000e+00 : f32
    %32 = vector.broadcast %cst_15 : f32 to vector<8x128xf32>
    %33 = arith.maximumf %31, %32 : vector<8x128xf32>
    %34 = math.absf %31 : vector<8x128xf32>
    %cst_16 = arith.constant 0.000000e+00 : f32
    %35 = vector.broadcast %cst_16 : f32 to vector<8x128xf32>
    %36 = arith.subf %35, %34 : vector<8x128xf32>
    %37 = math.exp %36 : vector<8x128xf32>
    %cst_17 = arith.constant 1.000000e+00 : f32
    %38 = vector.broadcast %cst_17 : f32 to vector<8x128xf32>
    %39 = arith.addf %38, %37 : vector<8x128xf32>
    %40 = math.log %39 : vector<8x128xf32>
    %41 = arith.addf %33, %40 : vector<8x128xf32>
    %42 = arith.subf %29, %41 : vector<8x128xf32>
    %cst_18 = arith.constant 2.000000e+00 : f32
    %43 = vector.broadcast %cst_18 : f32 to vector<8x128xf32>
    %44 = arith.mulf %43, %42 : vector<8x128xf32>
    %cst_19 = arith.constant 0.000000e+00 : f32
    %45 = vector.broadcast %cst_19 : f32 to vector<8x128xf32>
    %46 = arith.addf %44, %45 : vector<8x128xf32>
    %47 = arith.subf %24, %46 : vector<8x128xf32>
    %48 = math.tanh %6 : vector<8x128xf32>
    %cst_20 = arith.constant 1.000000e+00 : f32
    %49 = vector.broadcast %cst_20 : f32 to vector<8x128xf32>
    %50 = arith.mulf %49, %48 : vector<8x128xf32>
    %cst_21 = arith.constant 1.41893852 : f32
    %51 = vector.broadcast %cst_21 : f32 to vector<8x128xf32>
    %52 = arith.addf %51, %14 : vector<8x128xf32>
    %53 = tpu.iota {dimensions = array<i32: 1>} : vector<8x128xi32>
    %c6_i32 = arith.constant 6 : i32
    %54 = vector.broadcast %c6_i32 : i32 to vector<8x128xi32>
    %55 = arith.cmpi slt, %53, %54 : vector<8x128xi32>
    %cst_22 = arith.constant 0.000000e+00 : f32
    %56 = vector.broadcast %cst_22 : f32 to vector<8x128xf32>
    %57 = arith.select %55, %47, %56 : vector<8x128xi1>, vector<8x128xf32>
    %cst_23 = arith.constant dense<0.000000e+00> : vector<8xf32>
    %58 = vector.multi_reduction <add>, %57, %cst_23 [1] : vector<8x128xf32> to vector<8xf32>
    %59 = vector.shape_cast %58 : vector<8xf32> to vector<8x1xf32>
    %c0_24 = arith.constant 0 : index
    %c0_25 = arith.constant 0 : index
    %60 = vector.load %arg6[%c0_24, %c0_25] : memref<8x128xf32, #tpu.memory_space<vmem>>, vector<8x128xf32>
    tpu.vector_store %arg6[%c0_24, %c0_25], %27 {strides = array<i32>} : memref<8x128xf32, #tpu.memory_space<vmem>>, vector<8x128xf32>,
    %c0_26 = arith.constant 0 : index
    %c0_27 = arith.constant 0 : index
    %61 = vector.load %arg7[%c0_26, %c0_27] : memref<8x1xf32, #tpu.memory_space<vmem>>, vector<8x1xf32>
    tpu.vector_store %arg7[%c0_26, %c0_27], %59 {strides = array<i32>} : memref<8x1xf32, #tpu.memory_space<vmem>>, vector<8x1xf32>,
    %c0_28 = arith.constant 0 : index
    %c0_29 = arith.constant 0 : index
    %62 = vector.load %arg8[%c0_28, %c0_29] : memref<8x128xf32, #tpu.memory_space<vmem>>, vector<8x128xf32>
    tpu.vector_store %arg8[%c0_28, %c0_29], %50 {strides = array<i32>} : memref<8x128xf32, #tpu.memory_space<vmem>>, vector<8x128xf32>,
    %c0_30 = arith.constant 0 : index
    %c0_31 = arith.constant 0 : index
    %63 = vector.load %arg9[%c0_30, %c0_31] : memref<8x128xf32, #tpu.memory_space<vmem>>, vector<8x128xf32>
    tpu.vector_store %arg9[%c0_30, %c0_31], %14 {strides = array<i32>} : memref<8x128xf32, #tpu.memory_space<vmem>>, vector<8x128xf32>,
    %c0_32 = arith.constant 0 : index
    %c0_33 = arith.constant 0 : index
    %64 = vector.load %arg10[%c0_32, %c0_33] : memref<8x128xf32, #tpu.memory_space<vmem>>, vector<8x128xf32>
    tpu.vector_store %arg10[%c0_32, %c0_33], %52 {strides = array<i32>} : memref<8x128xf32, #tpu.memory_space<vmem>>, vector<8x128xf32>,
    return
  }
  func.func @transform_0(%arg0: i32) -> (i32, i32) {
    %c0_i32 = arith.constant 0 : i32
    %c0_i32_0 = arith.constant 0 : i32
    return %arg0, %c0_i32 : i32, i32
  }
  func.func @transform_1(%arg0: i32) -> (i32, i32) {
    %c0_i32 = arith.constant 0 : i32
    %c0_i32_0 = arith.constant 0 : i32
    %c0_i32_1 = arith.constant 0 : i32
    return %c0_i32, %c0_i32_0 : i32, i32
  }
  func.func @transform_2(%arg0: i32) -> (i32, i32) {
    %c0_i32 = arith.constant 0 : i32
    %c0_i32_0 = arith.constant 0 : i32
    %c0_i32_1 = arith.constant 0 : i32
    return %c0_i32, %c0_i32_0 : i32, i32
  }
  func.func @transform_3(%arg0: i32) -> (i32, i32) {
    %c0_i32 = arith.constant 0 : i32
    %c0_i32_0 = arith.constant 0 : i32
    %c0_i32_1 = arith.constant 0 : i32
    return %c0_i32, %c0_i32_0 : i32, i32
  }
  func.func @transform_4(%arg0: i32) -> (i32, i32) {
    %c0_i32 = arith.constant 0 : i32
    %c0_i32_0 = arith.constant 0 : i32
    return %arg0, %c0_i32 : i32, i32
  }
  func.func @transform_5(%arg0: i32) -> (i32, i32) {
    %c0_i32 = arith.constant 0 : i32
    %c0_i32_0 = arith.constant 0 : i32
    return %arg0, %c0_i32 : i32, i32
  }
  func.func @transform_6(%arg0: i32) -> (i32, i32) {
    %c0_i32 = arith.constant 0 : i32
    %c0_i32_0 = arith.constant 0 : i32
    return %arg0, %c0_i32 : i32, i32
  }
  func.func @transform_7(%arg0: i32) -> (i32, i32) {
    %c0_i32 = arith.constant 0 : i32
    %c0_i32_0 = arith.constant 0 : i32
    return %arg0, %c0_i32 : i32, i32
  }
  func.func @transform_8(%arg0: i32) -> (i32, i32) {
    %c0_i32 = arith.constant 0 : i32
    %c0_i32_0 = arith.constant 0 : i32
    return %arg0, %c0_i32 : i32, i32
  }
  func.func @transform_9(%arg0: i32) -> (i32, i32) {
    %c0_i32 = arith.constant 0 : i32
    %c0_i32_0 = arith.constant 0 : i32
    return %arg0, %c0_i32 : i32, i32
  }
}

</mosaic_0001>

<llo_original>
// kernel: tpu_custom_call.1
$region0: #{tpu_custom_call.1}
  #allocation0 [shape = 'u32[]', space=smem, size = 0x4, offset = 0x4, fixed_abs, tag = 'smem constant byte address 0x4 - core index']
  #allocation1 [shape = 'u32[144,128]{1,0:T(1,128)}', space=vmem, size = 0x12000, scoped, tag = 'internal scratch']
  %s0 = inlined_call_operand.hbm [shape: f32[8,64], index: 0, kind: input, shape index: {}]
  %s1 = inlined_call_operand.hbm [shape: f32[64,256], index: 1, kind: input, shape index: {}]
  %s2 = inlined_call_operand.vmem [shape: f32[1,256], index: 2, kind: input, shape index: {}]
  %s3 = inlined_call_operand.vmem [shape: f32[1,128], index: 3, kind: input, shape index: {}]
  %s4 = inlined_call_operand.vmem [shape: f32[8,128], index: 4, kind: input, shape index: {}]
  %s5 = inlined_call_operand.hbm [shape: f32[8,128], index: 5, kind: output, shape index: {0}]
  %s6 = inlined_call_operand.vmem [shape: f32[8,1], index: 6, kind: output, shape index: {1}]
  %s7 = inlined_call_operand.hbm [shape: f32[8,128], index: 7, kind: output, shape index: {2}]
  %s8 = inlined_call_operand.hbm [shape: f32[8,128], index: 8, kind: output, shape index: {3}]
  %s9 = inlined_call_operand.hbm [shape: f32[8,128], index: 9, kind: output, shape index: {4}]
  %10 = xla_tuple %s5, %s6, %s7, %s8, %s9
  %s11 = sld [smem:[#allocation0]]
  $region70: #{tpu_custom_call.1} parent=0
    _
  %s13 = ssub.s32 1, %s11
  %s14 = scalar_select 0, %s13, %s11
  $region1: #{tpu_custom_call.1} parent=0
    #allocation2 [shape = 'u8[4096]{0}', space=vmem, size = 0x1000, scoped, tag = 'input window, operand 0, single buffered']
    #allocation3 [shape = 's32[1]{0}', space=sflag, size = 0x4, scoped, tag = 'scoped memory for tpu_custom_call.1']
    #allocation4 [shape = 's32[1]{0}', space=sflag, size = 0x4, scoped, tag = 'scoped memory for tpu_custom_call.1']
    #allocation5 [shape = 'u8[65536]{0}', space=vmem, size = 0x10000, scoped, tag = 'input window, operand 1, single buffered']
    #allocation6 [shape = 's32[1]{0}', space=sflag, size = 0x4, scoped, tag = 'scoped memory for tpu_custom_call.1']
    #allocation7 [shape = 'u8[4096]{0}', space=vmem, size = 0x1000, scoped, tag = 'output window, operand 0, single buffered']
    #allocation8 [shape = 'u8[4096]{0}', space=vmem, size = 0x1000, scoped, tag = 'output window, operand 2, single buffered']
    #allocation9 [shape = 's32[1]{0}', space=sflag, size = 0x4, scoped, tag = 'scoped memory for tpu_custom_call.1']
    #allocation10 [shape = 'u8[4096]{0}', space=vmem, size = 0x1000, scoped, tag = 'output window, operand 3, single buffered']
    #allocation11 [shape = 'u8[4096]{0}', space=vmem, size = 0x1000, scoped, tag = 'output window, operand 4, single buffered']
    #allocation12 [shape = 's32[1]{0}', space=sflag, size = 0x4, scoped, tag = 'scoped memory for tpu_custom_call.1']
    %15 = vsyncpa [#allocation3], 0
    %16 = vsyncpa [#allocation6], 0
    %17 = vsyncpa [#allocation4], 0
    %18 = vsyncpa [#allocation9], 0
    %19 = vsyncpa [#allocation12], 0
    // Predicated region
    $region2: #{tpu_custom_call.1} parent=1 // pred_check
      _
    $region3: #{tpu_custom_call.1} parent=1 // pred_check_branch
      %21 = sbr.rel (0) target = $region5
    $region4: #{tpu_custom_call.1} parent=1 // pred_region
      %s23 = ssub.s32 128, 128
      %24 = vsyncadd [#allocation3], %s23
      %s26 = sshll.u32 [#allocation2], 4
      %s27 = int_to_ptr.vmem [resolvable:$true] %s26
      %29 = dma.hbm_to_vmem [thread:$0]  %s0, 128, %s27, [#allocation3]
    $region5: #{tpu_custom_call.1} parent=1 // pred_fallthru
      _
    // Predicated region
    $region6: #{tpu_custom_call.1} parent=1 // pred_check
      _
    $region7: #{tpu_custom_call.1} parent=1 // pred_check_branch
      %31 = sbr.rel (0) target = $region9
    $region8: #{tpu_custom_call.1} parent=1 // pred_region
      %s33 = ssub.s32 2048, 2048
      %34 = vsyncadd [#allocation6], %s33
      %s35 = sshll.u32 [#allocation5], 4
      %s36 = int_to_ptr.vmem [resolvable:$true] %s35
      %41 = dma.hbm_to_vmem [thread:$0]  %s1, 2048, %s36, [#allocation6], 256, 256, 16
    $region9: #{tpu_custom_call.1} parent=1 // pred_fallthru
      _
    // Predicated region
    $region10: #{tpu_custom_call.1} parent=1 // pred_check
      _
    $region11: #{tpu_custom_call.1} parent=1 // pred_check_branch
      %43 = sbr.rel (0) target = $region13
    $region12: #{tpu_custom_call.1} parent=1 // pred_region
      _
    $region13: #{tpu_custom_call.1} parent=1 // pred_fallthru
      _
    // Predicated region
    $region14: #{tpu_custom_call.1} parent=1 // pred_check
      _
    $region15: #{tpu_custom_call.1} parent=1 // pred_check_branch
      %45 = sbr.rel (0) target = $region17
    $region16: #{tpu_custom_call.1} parent=1 // pred_region
      _
    $region17: #{tpu_custom_call.1} parent=1 // pred_fallthru
      _
    // Predicated region
    $region18: #{tpu_custom_call.1} parent=1 // pred_check
      _
    $region19: #{tpu_custom_call.1} parent=1 // pred_check_branch
      %47 = sbr.rel (0) target = $region21
    $region20: #{tpu_custom_call.1} parent=1 // pred_region
      _
    $region21: #{tpu_custom_call.1} parent=1 // pred_fallthru
      _
    // Predicated region
    $region22: #{tpu_custom_call.1} parent=1 // pred_check
      _
    $region23: #{tpu_custom_call.1} parent=1 // pred_check_branch
      %49 = sbr.rel (0) target = $region25
    $region24: #{tpu_custom_call.1} parent=1 // pred_region
      %50 = dma.done [#allocation3], 128
    $region25: #{tpu_custom_call.1} parent=1 // pred_fallthru
      _
    // Predicated region
    $region26: #{tpu_custom_call.1} parent=1 // pred_check
      _
    $region27: #{tpu_custom_call.1} parent=1 // pred_check_branch
      %52 = sbr.rel (0) target = $region29
    $region28: #{tpu_custom_call.1} parent=1 // pred_region
      %53 = dma.done [#allocation6], 2048
    $region29: #{tpu_custom_call.1} parent=1 // pred_fallthru
      _
    %v54 = vld [vmem:[#allocation2] sm:$0xff]
    %v55 = vld [vmem:[#allocation5] sm:$0xff]
    %v56 = vld [vmem:[#allocation5 + $0x8] sm:$0xff]
    %v57 = vld [vmem:[#allocation5 + $0x10] sm:$0xff]
    %v58 = vld [vmem:[#allocation5 + $0x18] sm:$0xff]
    %v59 = vld [vmem:[#allocation5 + $0x20] sm:$0xff]
    %v60 = vld [vmem:[#allocation5 + $0x28] sm:$0xff]
    %v61 = vld [vmem:[#allocation5 + $0x30] sm:$0xff]
    %v62 = vld [vmem:[#allocation5 + $0x38] sm:$0xff]
    %v63 = vld [vmem:[#allocation5 + $0x40] sm:$0xff]
    %v64 = vld [vmem:[#allocation5 + $0x48] sm:$0xff]
    %v65 = vld [vmem:[#allocation5 + $0x50] sm:$0xff]
    %v66 = vld [vmem:[#allocation5 + $0x58] sm:$0xff]
    %v67 = vld [vmem:[#allocation5 + $0x60] sm:$0xff]
    %v68 = vld [vmem:[#allocation5 + $0x68] sm:$0xff]
    %v69 = vld [vmem:[#allocation5 + $0x70] sm:$0xff]
    %v70 = vld [vmem:[#allocation5 + $0x78] sm:$0xff]
    %v71 = vld [vmem:[%s2] sm:$0x3]
    %v73 = vlaneseq
    %v74 = vshrl.u32 %v73, 7
    %v75 = vsub.s32 0, %v74
    %v76 = vrot.slane %v71, %v75
    %v77 = vlaneseq
    %v78 = vshrl.u32 %v77, 7
    %v79 = vsub.s32 1, %v78
    %v80 = vrot.slane %v71, %v79
    %vm83 = vcmask 523264
    %v85 = vsel %vm83, %v54, 0
    %87 = vmatprep.subr.mxu0 %v56
    %88 = vmatpush1.msra.mxu0 %v55
    %89 = vmatprep.subr.mxu0 %v58
    %90 = vmatpush1.msra.mxu0 %v57
    %91 = vmatprep.subr.mxu0 %v60
    %92 = vmatpush1.msra.mxu0 %v59
    %93 = vmatprep.subr.mxu0 %v62
    %94 = vmatpush1.msra.mxu0 %v61
    %95 = vmatprep.subr.mxu0 %v64
    %96 = vmatpush1.msra.mxu0 %v63
    %97 = vmatprep.subr.mxu0 %v66
    %98 = vmatpush1.msra.mxu0 %v65
    %99 = vmatprep.subr.mxu0 %v68
    %100 = vmatpush1.msra.mxu0 %v67
    %101 = vmatprep.subr.mxu0 %v70
    %102 = vmatpush1.msra.mxu0 %v69
    %103 = vmatprep.subr.mxu0 0.0
    %104 = vmatpush1.msra.mxu0 0.0
    %105 = vmatprep.subr.mxu0 0.0
    %106 = vmatpush1.msra.mxu0 0.0
    %107 = vmatprep.subr.mxu0 0.0
    %108 = vmatpush1.msra.mxu0 0.0
    %109 = vmatprep.subr.mxu0 0.0
    %110 = vmatpush1.msra.mxu0 0.0
    %111 = vmatprep.subr.mxu0 0.0
    %112 = vmatpush1.msra.mxu0 0.0
    %113 = vmatprep.subr.mxu0 0.0
    %114 = vmatpush1.msra.mxu0 0.0
    %115 = vmatprep.subr.mxu0 0.0
    %116 = vmatpush1.msra.mxu0 0.0
    %117 = vmatprep.subr.mxu0 0.0
    %118 = vmatpush1.msra.mxu0 0.0
    %119 = vmatprep.subr.mxu0 0.0
    %120 = vmatpush1.msra.mxu0 0.0
    %121 = vmatprep.subr.mxu0 0.0
    %122 = vmatpush1.msra.mxu0 0.0
    %123 = vmatprep.subr.mxu0 0.0
    %124 = vmatpush1.msra.mxu0 0.0
    %125 = vmatprep.subr.mxu0 0.0
    %126 = vmatpush1.msra.mxu0 0.0
    %127 = vmatprep.subr.mxu0 0.0
    %128 = vmatpush1.msra.mxu0 0.0
    %129 = vmatprep.subr.mxu0 0.0
    %130 = vmatpush1.msra.mxu0 0.0
    %131 = vmatprep.subr.mxu0 0.0
    %132 = vmatpush1.msra.mxu0 0.0
    %133 = vmatprep.subr.mxu0 0.0
    %134 = vmatpush1.msra.mxu0 0.0
    %135 = vmatprep.subr.mxu0 0.0
    %136 = vmatpush1.msra.mxu0 0.0
    %137 = vmatprep.subr.mxu0 0.0
    %138 = vmatpush1.msra.mxu0 0.0
    %139 = vmatprep.subr.mxu0 0.0
    %140 = vmatpush1.msra.mxu0 0.0
    %141 = vmatprep.subr.mxu0 0.0
    %142 = vmatpush1.msra.mxu0 0.0
    %143 = vmatprep.subr.mxu0 0.0
    %144 = vmatpush1.msra.mxu0 0.0
    %145 = vmatprep.subr.mxu0 0.0
    %146 = vmatpush1.msra.mxu0 0.0
    %147 = vmatprep.subr.mxu0 0.0
    %148 = vmatpush1.msra.mxu0 0.0
    %149 = vmatprep.subr.mxu0 0.0
    %150 = vmatpush1.msra.mxu0 0.0
    %151 = vmatprep.mubr.f32.mxu0 0.0
    %152 = vmatmul.mubr.f32.gmra.mrb[0].mxu0 %v85
    %v153 = vpop.f32.mrb[0].mxu0
    %v154 = vadd.f32 %v76, %v153
    %v155 = vpop.f32.mrb[0].mxu0
    %v156 = vadd.f32 %v80, %v155
    %157 = vdwg.mxu0
    %v158 = vtanh.pop %v156
    %v159 = vadd.f32 %v158, 1.0
    %v160 = vmul.f32 %v159, 11.0
    %v161 = vadd.f32 %v160, -20.0
    %v162 = vmul.f32 %v161, 1.442695
    %v163 = vpow.pop %v162
    %v164 = vld [vmem:[%s4] sm:$0xff]
    %v165 = vmul.f32 %v163, %v164
    %v166 = vadd.f32 %v154, %v165
    %v167 = vmul.f32 %v164, -0.5
    %v168 = vmul.f32 %v167, %v164
    %v169 = vsub.f32 %v168, %v161
    %v170 = vsub.f32 %v169, 0.9189385
    %v171 = vtanh.pop %v166
    %v172 = vsub.f32 0.6931472, %v166
    %v173 = vmul.f32 %v166, -2.0
    %v174 = vmax.f32 %v173, 0.0
    %v175 = vand.u32 2147483647, %v173
    %v176 = vsub.f32 0.0, %v175
    %v177 = vmul.f32 %v176, 1.442695
    %v178 = vpow.pop %v177
    %v179 = vadd.f32 %v178, 1.0
    %v180 = vlog2.pop %v179
    %v181 = vmul.f32 %v180, 0.6931472
    %v182 = vadd.f32 %v174, %v181
    %v183 = vsub.f32 %v172, %v182
    %v184 = vmul.f32 %v183, 2.0
    %v185 = vadd.f32 %v184, 0.0
    %v186 = vsub.f32 %v170, %v185
    %v187 = vtanh.pop %v154
    %v188 = vadd.f32 %v161, 1.4189385
    %v189 = vlaneseq
    %v190 = vand.u32 %v189, 127
    %vm191 = vcmp.lt.s32.totalorder %v190, 6
    %v192 = vsel %vm191, %v186, 0.0
    %193 = vadd.xlane.f32.xlu0 %v192
    %v194 = vpop.xlane.xlu0 %193
    %195 = vst [vmem:[#allocation7] sm:$0xff] %v171
    %vm196 = vcmask 7168
    %197 = vst.msk [vmem:[%s6] sm:$0xff] %vm196, %v194
    %198 = vst [vmem:[#allocation8] sm:$0xff] %v187
    %199 = vst [vmem:[#allocation10] sm:$0xff] %v161
    %200 = vst [vmem:[#allocation11] sm:$0xff] %v188
    // Predicated region
    $region30: #{tpu_custom_call.1} parent=1 // pred_check
      _
    $region31: #{tpu_custom_call.1} parent=1 // pred_check_branch
      %202 = sbr.rel (0) target = $region33
    $region32: #{tpu_custom_call.1} parent=1 // pred_region
      %s204 = ssub.s32 128, 128
      %205 = vsyncadd [#allocation4], %s204
      %s207 = sshll.u32 [#allocation7], 4
      %s208 = int_to_ptr.vmem [resolvable:$true] %s207
      %210 = dma.vmem_to_hbm [thread:$0]  %s208, 128, %s5, [#allocation4]
    $region33: #{tpu_custom_call.1} parent=1 // pred_fallthru
      _
    // Predicated region
    $region34: #{tpu_custom_call.1} parent=1 // pred_check
      _
    $region35: #{tpu_custom_call.1} parent=1 // pred_check_branch
      %212 = sbr.rel (0) target = $region37
    $region36: #{tpu_custom_call.1} parent=1 // pred_region
      _
    $region37: #{tpu_custom_call.1} parent=1 // pred_fallthru
      _
    // Predicated region
    $region38: #{tpu_custom_call.1} parent=1 // pred_check
      _
    $region39: #{tpu_custom_call.1} parent=1 // pred_check_branch
      %214 = sbr.rel (0) target = $region41
    $region40: #{tpu_custom_call.1} parent=1 // pred_region
      %s216 = ssub.s32 128, 128
      %217 = vsyncadd [#allocation9], %s216
      %s219 = sshll.u32 [#allocation8], 4
      %s220 = int_to_ptr.vmem [resolvable:$true] %s219
      %222 = dma.vmem_to_hbm [thread:$0]  %s220, 128, %s7, [#allocation9]
    $region41: #{tpu_custom_call.1} parent=1 // pred_fallthru
      _
    // Predicated region
    $region42: #{tpu_custom_call.1} parent=1 // pred_check
      _
    $region43: #{tpu_custom_call.1} parent=1 // pred_check_branch
      %224 = sbr.rel (0) target = $region45
    $region44: #{tpu_custom_call.1} parent=1 // pred_region
      %s226 = ssub.s32 128, 128
      %227 = vsyncadd [#allocation9], %s226
      %s229 = sshll.u32 [#allocation10], 4
      %s230 = int_to_ptr.vmem [resolvable:$true] %s229
      %232 = dma.vmem_to_hbm [thread:$0]  %s230, 128, %s8, [#allocation9]
    $region45: #{tpu_custom_call.1} parent=1 // pred_fallthru
      _
    // Predicated region
    $region46: #{tpu_custom_call.1} parent=1 // pred_check
      _
    $region47: #{tpu_custom_call.1} parent=1 // pred_check_branch
      %234 = sbr.rel (0) target = $region49
    $region48: #{tpu_custom_call.1} parent=1 // pred_region
      %s236 = ssub.s32 128, 128
      %237 = vsyncadd [#allocation12], %s236
      %s239 = sshll.u32 [#allocation11], 4
      %s240 = int_to_ptr.vmem [resolvable:$true] %s239
      %242 = dma.vmem_to_hbm [thread:$0]  %s240, 128, %s9, [#allocation12]
    $region49: #{tpu_custom_call.1} parent=1 // pred_fallthru
      _
    // Predicated region
    $region50: #{tpu_custom_call.1} parent=1 // pred_check
      _
    $region51: #{tpu_custom_call.1} parent=1 // pred_check_branch
      %244 = sbr.rel (0) target = $region53
    $region52: #{tpu_custom_call.1} parent=1 // pred_region
      %245 = dma.done [#allocation4], 128
    $region53: #{tpu_custom_call.1} parent=1 // pred_fallthru
      _
    // Predicated region
    $region54: #{tpu_custom_call.1} parent=1 // pred_check
      _
    $region55: #{tpu_custom_call.1} parent=1 // pred_check_branch
      %247 = sbr.rel (0) target = $region57
    $region56: #{tpu_custom_call.1} parent=1 // pred_region
      _
    $region57: #{tpu_custom_call.1} parent=1 // pred_fallthru
      _
    // Predicated region
    $region58: #{tpu_custom_call.1} parent=1 // pred_check
      _
    $region59: #{tpu_custom_call.1} parent=1 // pred_check_branch
      %249 = sbr.rel (0) target = $region61
    $region60: #{tpu_custom_call.1} parent=1 // pred_region
      %250 = dma.done [#allocation9], 128
    $region61: #{tpu_custom_call.1} parent=1 // pred_fallthru
      _
    // Predicated region
    $region62: #{tpu_custom_call.1} parent=1 // pred_check
      _
    $region63: #{tpu_custom_call.1} parent=1 // pred_check_branch
      %252 = sbr.rel (0) target = $region65
    $region64: #{tpu_custom_call.1} parent=1 // pred_region
      %253 = dma.done [#allocation9], 128
    $region65: #{tpu_custom_call.1} parent=1 // pred_fallthru
      _
    // Predicated region
    $region66: #{tpu_custom_call.1} parent=1 // pred_check
      _
    $region67: #{tpu_custom_call.1} parent=1 // pred_check_branch
      %255 = sbr.rel (0) target = $region69
    $region68: #{tpu_custom_call.1} parent=1 // pred_region
      %256 = dma.done [#allocation12], 128
    $region69: #{tpu_custom_call.1} parent=1 // pred_fallthru
      _
    %257 = vsyncpa [#allocation3], 1
    %258 = vsyncpa [#allocation6], 1
    %259 = vsyncpa [#allocation4], 1
    %260 = vsyncpa [#allocation9], 1
    %261 = vsyncpa [#allocation12], 1

</llo_original>
